<compile_context>
chip_gen: v7x
topology: tpu7x:2x2x1
jax: 0.10.0
libtpu: 0.0.40
codegen_flags: <defaults>
</compile_context>

<pallas_src>
import jax
import jax.numpy as jnp
from jax.experimental import pallas as pl
from jax.experimental.pallas import tpu as pltpu

_MIB = 1024 * 1024


def _round_up(x, m):
    return (x + m - 1) // m * m


# ----------------------------------------------------------------------------
# Kernels
# ----------------------------------------------------------------------------
def _ffn_kernel_acc(x_ref, w1_ref, b1_ref, w2_ref, b2_ref, o_ref, acc_ref):
    """Narrow-output (e.g. bf16) variant: f32 accumulator scratch resident
    across the f (4H reduction) axis; o_ref is written (cast) only on the
    last reduction step."""
    f = pl.program_id(1)

    @pl.when(f == 0)
    def _init():
        acc_ref[...] = jnp.zeros_like(acc_ref)

    # First matmul (MXU, f32 accumulate) + bias + ReLU for this 4H slice.
    h = jnp.dot(x_ref[...], w1_ref[...], preferred_element_type=jnp.float32)
    h = jnp.maximum(h + b1_ref[...], 0.0)

    # Second matmul: partial contribution of this 4H slice, f32 accumulate.
    acc_ref[...] += jnp.dot(h.astype(w2_ref.dtype), w2_ref[...],
                            preferred_element_type=jnp.float32)

    @pl.when(f == pl.num_programs(1) - 1)
    def _finalize():
        o_ref[...] = (acc_ref[...] + b2_ref[...]).astype(o_ref.dtype)


def _ffn_kernel_f32out(x_ref, w1_ref, b1_ref, w2_ref, b2_ref, o_ref):
    """f32-output variant: the output BlockSpec index is constant over the f
    axis, so the output block is VMEM-resident across the reduction and we
    accumulate into it directly (no scratch, no acc->o copy)."""
    f = pl.program_id(1)

    @pl.when(f == 0)
    def _init():
        o_ref[...] = jnp.zeros_like(o_ref)

    h = jnp.dot(x_ref[...], w1_ref[...], preferred_element_type=jnp.float32)
    h = jnp.maximum(h + b1_ref[...], 0.0)
    o_ref[...] += jnp.dot(h.astype(w2_ref.dtype), w2_ref[...],
                          preferred_element_type=jnp.float32)

    @pl.when(f == pl.num_programs(1) - 1)
    def _final():
        o_ref[...] += b2_ref[...]


# ----------------------------------------------------------------------------
# Host-side helpers
# ----------------------------------------------------------------------------
def _chip_defaults():
    """Per-generation default (tm, tf) and usable VMEM budget (bytes)."""
    vmem_cap = None
    try:
        vmem_cap = int(pltpu.get_tpu_info().vmem_capacity_bytes)
    except Exception:
        pass
    kind = ""
    try:
        kind = jax.devices()[0].device_kind.lower()
    except Exception:
        pass
    if vmem_cap is None:
        vmem_cap = 64 * _MIB if "v7" in kind else 128 * _MIB

    if "v5" in kind:
        # v5e: ~240 flops/byte roofline -> tm=256 is already near compute
        # bound; larger tf halves the (tm, Hp) f32 accumulator RMW passes.
        tm, tf = 256, 1024
    elif "v7" in kind or vmem_cap <= 64 * _MIB:
        # v7x: 64 MiB VMEM/TC and ~620 flops/byte per core -> smaller tf,
        # bigger tm (weight-reuse AI ~ tm).
        tm, tf = 512, 256
    else:
        # v6e: 128 MiB VMEM, ~680 flops/byte -> tm=512 halves weight traffic.
        tm, tf = 512, 512

    budget = int(0.85 * vmem_cap)  # headroom for compiler scratch / biases
    return tm, tf, budget


def _vmem_bytes(tm, tf, Hp, compute_bytes, out_bytes, use_scratch):
    b = (2 * tm * Hp * compute_bytes       # x tile (double-buffered)
         + 2 * Hp * tf * compute_bytes     # W1 column slice (double-buffered)
         + 2 * tf * Hp * compute_bytes     # W2 row slice (double-buffered)
         + 2 * tf * 4 + 2 * Hp * 4         # b1 slice, b2
         + 2 * tm * Hp * out_bytes         # output tile
         + tm * tf * 4)                    # intermediate h (f32)
    if use_scratch:
        b += tm * Hp * 4                   # f32 accumulator scratch
    return b


def prepare_ffn_params(w1, b1, w2, b2, *, compute_dtype=jnp.bfloat16):
    """Pad weights/biases to lane-dense multiples of 128 and cast weights to
    the matmul compute dtype.  Call once (outside the hot path) and reuse:
    the pad/cast otherwise re-reads the full weights from HBM every call.
    Padding is skipped when H and 4H are already multiples of 128."""
    H, H4 = w1.shape
    Hp = _round_up(H, 128)
    Fp = _round_up(H4, 128)

    def _pad2(a, pr, pc):
        return a if (pr == 0 and pc == 0) else jnp.pad(a, ((0, pr), (0, pc)))

    w1p = _pad2(w1, Hp - H, Fp - H4).astype(compute_dtype)
    w2p = _pad2(w2, Fp - H4, Hp - H).astype(compute_dtype)
    b1p = (b1 if Fp == H4 else jnp.pad(b1, (0, Fp - H4)))
    b2p = (b2 if Hp == H else jnp.pad(b2, (0, Hp - H)))
    b1p = b1p.reshape(1, Fp).astype(jnp.float32)
    b2p = b2p.reshape(1, Hp).astype(jnp.float32)
    return w1p, b1p, w2p, b2p, H, H4


def ffn_apply(x, w1p, b1p, w2p, b2p, H, H4, *, tm=None, tf=None,
              compute_dtype=jnp.bfloat16):
    """x: (B, S, H); w1p/b1p/w2p/b2p from prepare_ffn_params."""
    del H4  # implicit in the padded weight shapes
    B, S, _ = x.shape
    M = B * S
    Hp, Fp = w1p.shape

    tm_def, tf_def, vmem_budget = _chip_defaults()
    tm = tm_def if tm is None else tm
    tf = tf_def if tf is None else tf

    tf = min(_round_up(tf, 128), Fp)
    tm_eff = min(tm, _round_up(M, 8))

    out_dtype = x.dtype          # bf16 x -> bf16 writeback (half the traffic)
    out_bytes = jnp.dtype(out_dtype).itemsize
    cbytes = jnp.dtype(compute_dtype).itemsize
    use_scratch = out_dtype != jnp.float32

    # Shrink tiles until the working set fits the chip's VMEM budget
    # (v7x: 64 MiB per TensorCore).
    while _vmem_bytes(tm_eff, tf, Hp, cbytes, out_bytes,
                      use_scratch) > vmem_budget:
        if tf > 128:
            tf = max(128, _round_up(tf // 2, 128))
        elif tm_eff > 8:
            tm_eff = max(8, _round_up(tm_eff // 2, 8))
        else:
            break

    # Make tf divide the (already 128-aligned) padded FFN dim so the prepared
    # weights need no further padding.
    while Fp % tf:
        tf -= 128

    Mp = _round_up(M, tm_eff)

    # Zero padding keeps results exact: padded x columns hit zero W1 rows,
    # padded 4H columns contribute through zero W2 rows, padded output
    # rows/cols are sliced off below.
    x2d = x.reshape(M, H)
    if Mp != M or Hp != H:
        x2d = jnp.pad(x2d, ((0, Mp - M), (0, Hp - H)))
    x2d = x2d.astype(compute_dtype)

    in_specs = [
        pl.BlockSpec((tm_eff, Hp), lambda i, f: (i, 0)),  # x row tile
        pl.BlockSpec((Hp, tf), lambda i, f: (0, f)),      # W1 column slice
        pl.BlockSpec((1, tf), lambda i, f: (0, f)),       # b1 slice
        pl.BlockSpec((tf, Hp), lambda i, f: (f, 0)),      # W2 row slice
        pl.BlockSpec((1, Hp), lambda i, f: (0, 0)),       # b2 (finalize only)
    ]
    # NOTE: if profiling shows exposed DMA at f-step boundaries, add
    # pipeline_mode=pl.Buffered(3) to the W1/W2 specs only.
    out_spec = pl.BlockSpec((tm_eff, Hp), lambda i, f: (i, 0))

    if use_scratch:
        kernel = _ffn_kernel_acc
        scratch = [pltpu.VMEM((tm_eff, Hp), jnp.float32)]
    else:
        kernel = _ffn_kernel_f32out
        scratch = []

    out2d = pl.pallas_call(
        kernel,
        out_shape=jax.ShapeDtypeStruct((Mp, Hp), out_dtype),
        grid_spec=pltpu.PrefetchScalarGridSpec(
            num_scalar_prefetch=0,
            grid=(Mp // tm_eff, Fp // tf),
            in_specs=in_specs,
            out_specs=out_spec,
            scratch_shapes=scratch,
        ),
        compiler_params=pltpu.CompilerParams(
            dimension_semantics=("parallel", "arbitrary"),
            vmem_limit_bytes=int(vmem_budget),
        ),
    )(x2d, w1p, b1p, w2p, b2p)

    # Output already in x.dtype: no final cast needed.
    return out2d[:M, :H].reshape(B, S, H)


def position_wise_feed_forward(x, w1, b1, w2, b2, *, tm=None, tf=None,
                               compute_dtype=jnp.bfloat16):
    """x: (B, S, H). w1: (H, 4H), b1: (4H,), w2: (4H, H), b2: (H,).

    Weights are in (in, out) layout (i.e. torch Linear weight.T).  For the
    hot path, call prepare_ffn_params once and reuse its result with
    ffn_apply to avoid re-padding/casting the weights every invocation.
    """
    params = prepare_ffn_params(w1, b1, w2, b2, compute_dtype=compute_dtype)
    return ffn_apply(x, *params, tm=tm, tf=tf, compute_dtype=compute_dtype)


def _reference(x, w1, b1, w2, b2):
    h = jnp.maximum(x @ w1 + b1, 0.0)
    return h @ w2 + b2


if __name__ == "__main__":
    # Small shapes: batch=2, seq=8, hidden=32 -> intermediate=128
    B, S, H = 2, 8, 32
    H4 = 4 * H
    initializer_range = 0.02

    key = jax.random.PRNGKey(0)
    kx, kw1, kb1, kw2, kb2 = jax.random.split(key, 5)

    x = jax.random.normal(kx, (B, S, H), dtype=jnp.float32)

    # torch.nn.Linear stores weight as (out, in); we build (in, out) directly.
    # Weights ~ N(0, initializer_range); biases keep Linear's default
    # U(-1/sqrt(fan_in), 1/sqrt(fan_in)) init.
    w1 = initializer_range * jax.random.normal(kw1, (H, H4), dtype=jnp.float32)
    b1 = jax.random.uniform(kb1, (H4,), minval=-1.0 / jnp.sqrt(H),
                            maxval=1.0 / jnp.sqrt(H), dtype=jnp.float32)
    w2 = initializer_range * jax.random.normal(kw2, (H4, H), dtype=jnp.float32)
    b2 = jax.random.uniform(kb2, (H,), minval=-1.0 / jnp.sqrt(H4),
                            maxval=1.0 / jnp.sqrt(H4), dtype=jnp.float32)

    ffn = jax.jit(position_wise_feed_forward)
    out = ffn(x, w1, b1, w2, b2)
    out = jax.block_until_ready(out)

    ref = _reference(x, w1, b1, w2, b2)
    assert out.shape == (B, S, H)
    assert out.dtype == x.dtype
    # bf16 matmul inputs (f32 accumulation) -> slightly looser tolerance.
    assert jnp.allclose(out, ref, atol=2e-2, rtol=2e-2), "mismatch vs reference"

    print("KERNEL_OK")
</pallas_src>

<mosaic_0001>
module attributes {stable_mosaic.version = 11 : i64} {
  func.func @_ffn_kernel_f32out(%arg0: i32, %arg1: i32, %arg2: memref<16x128xbf16, #tpu.memory_space<vmem>>, %arg3: memref<128x128xbf16, #tpu.memory_space<vmem>>, %arg4: memref<1x128xf32, #tpu.memory_space<vmem>>, %arg5: memref<128x128xbf16, #tpu.memory_space<vmem>>, %arg6: memref<1x128xf32, #tpu.memory_space<vmem>>, %arg7: memref<16x128xf32, #tpu.memory_space<vmem>>) attributes {dimension_semantics = [#tpu.dimension_semantics<parallel>, #tpu.dimension_semantics<arbitrary>], iteration_bounds = array<i64: 1, 1>, scalar_prefetch = 0 : i64, scratch_operands = 0 : i64, tpu.core_type = #tpu.core_type<tc>, window_params = [{transform_indices = @transform_0, window_bounds = array<i64: 16, 128>}, {transform_indices = @transform_1, window_bounds = array<i64: 128, 128>}, {transform_indices = @transform_2, window_bounds = array<i64: 1, 128>}, {transform_indices = @transform_3, window_bounds = array<i64: 128, 128>}, {pipeline_mode = #tpu.pipeline_mode<synchronous>, transform_indices = @transform_4, window_bounds = array<i64: 1, 128>}, {transform_indices = @transform_5, window_bounds = array<i64: 16, 128>}]} {
    %c0_i32 = arith.constant 0 : i32
    %0 = arith.cmpi eq, %arg1, %c0_i32 : i32
    %1 = arith.extui %0 : i1 to i32
    %c0_i32_0 = arith.constant 0 : i32
    %2 = arith.cmpi ne, %1, %c0_i32_0 : i32
    scf.if %2 {
      %cst_16 = arith.constant 0.000000e+00 : f32
      %20 = vector.broadcast %cst_16 : f32 to vector<16x128xf32>
      %c0_17 = arith.constant 0 : index
      %c0_18 = arith.constant 0 : index
      %21 = vector.load %arg7[%c0_17, %c0_18] : memref<16x128xf32, #tpu.memory_space<vmem>>, vector<16x128xf32>
      tpu.vector_store %arg7[%c0_17, %c0_18], %20 {strides = array<i32>} : memref<16x128xf32, #tpu.memory_space<vmem>>, vector<16x128xf32>,
    } else {
    }
    %c0 = arith.constant 0 : index
    %c0_1 = arith.constant 0 : index
    %3 = vector.load %arg2[%c0, %c0_1] : memref<16x128xbf16, #tpu.memory_space<vmem>>, vector<16x128xbf16>
    %c0_2 = arith.constant 0 : index
    %c0_3 = arith.constant 0 : index
    %4 = vector.load %arg3[%c0_2, %c0_3] : memref<128x128xbf16, #tpu.memory_space<vmem>>, vector<128x128xbf16>
    %cst = arith.constant dense<0.000000e+00> : vector<16x128xf32>
    %5 = tpu.matmul %3, %4, %cst {dimension_numbers = #tpu.dot_dimension_numbers<[1], [0], [0], [1], [0, 0, 1, 1], [], []>} : vector<16x128xbf16>, vector<128x128xbf16>, vector<16x128xf32> -> vector<16x128xf32>
    %c0_4 = arith.constant 0 : index
    %c0_5 = arith.constant 0 : index
    %6 = vector.load %arg4[%c0_4, %c0_5] : memref<1x128xf32, #tpu.memory_space<vmem>>, vector<1x128xf32>
    %7 = vector.broadcast %6 : vector<1x128xf32> to vector<16x128xf32>
    %8 = arith.addf %5, %7 : vector<16x128xf32>
    %cst_6 = arith.constant 0.000000e+00 : f32
    %9 = vector.broadcast %cst_6 : f32 to vector<16x128xf32>
    %10 = arith.maximumf %8, %9 : vector<16x128xf32>
    %c0_7 = arith.constant 0 : index
    %c0_8 = arith.constant 0 : index
    %11 = vector.load %arg7[%c0_7, %c0_8] : memref<16x128xf32, #tpu.memory_space<vmem>>, vector<16x128xf32>
    %12 = arith.truncf %10 : vector<16x128xf32> to vector<16x128xbf16>
    %c0_9 = arith.constant 0 : index
    %c0_10 = arith.constant 0 : index
    %13 = vector.load %arg5[%c0_9, %c0_10] : memref<128x128xbf16, #tpu.memory_space<vmem>>, vector<128x128xbf16>
    %cst_11 = arith.constant dense<0.000000e+00> : vector<16x128xf32>
    %14 = tpu.matmul %12, %13, %cst_11 {dimension_numbers = #tpu.dot_dimension_numbers<[1], [0], [0], [1], [0, 0, 1, 1], [], []>} : vector<16x128xbf16>, vector<128x128xbf16>, vector<16x128xf32> -> vector<16x128xf32>
    %15 = arith.addf %11, %14 : vector<16x128xf32>
    %c0_12 = arith.constant 0 : index
    %c0_13 = arith.constant 0 : index
    %16 = vector.load %arg7[%c0_12, %c0_13] : memref<16x128xf32, #tpu.memory_space<vmem>>, vector<16x128xf32>
    tpu.vector_store %arg7[%c0_12, %c0_13], %15 {strides = array<i32>} : memref<16x128xf32, #tpu.memory_space<vmem>>, vector<16x128xf32>,
    %c0_i32_14 = arith.constant 0 : i32
    %17 = arith.cmpi eq, %arg1, %c0_i32_14 : i32
    %18 = arith.extui %17 : i1 to i32
    %c0_i32_15 = arith.constant 0 : i32
    %19 = arith.cmpi ne, %18, %c0_i32_15 : i32
    scf.if %19 {
      %c0_16 = arith.constant 0 : index
      %c0_17 = arith.constant 0 : index
      %20 = vector.load %arg7[%c0_16, %c0_17] : memref<16x128xf32, #tpu.memory_space<vmem>>, vector<16x128xf32>
      %c0_18 = arith.constant 0 : index
      %c0_19 = arith.constant 0 : index
      %21 = vector.load %arg6[%c0_18, %c0_19] : memref<1x128xf32, #tpu.memory_space<vmem>>, vector<1x128xf32>
      %22 = vector.broadcast %21 : vector<1x128xf32> to vector<16x128xf32>
      %23 = arith.addf %20, %22 : vector<16x128xf32>
      %c0_20 = arith.constant 0 : index
      %c0_21 = arith.constant 0 : index
      %24 = vector.load %arg7[%c0_20, %c0_21] : memref<16x128xf32, #tpu.memory_space<vmem>>, vector<16x128xf32>
      tpu.vector_store %arg7[%c0_20, %c0_21], %23 {strides = array<i32>} : memref<16x128xf32, #tpu.memory_space<vmem>>, vector<16x128xf32>,
    } else {
    }
    return
  }
  func.func @transform_0(%arg0: i32, %arg1: i32) -> (i32, i32) {
    %c0_i32 = arith.constant 0 : i32
    %c0_i32_0 = arith.constant 0 : i32
    return %arg0, %c0_i32 : i32, i32
  }
  func.func @transform_1(%arg0: i32, %arg1: i32) -> (i32, i32) {
    %c0_i32 = arith.constant 0 : i32
    %c0_i32_0 = arith.constant 0 : i32
    return %c0_i32, %arg1 : i32, i32
  }
  func.func @transform_2(%arg0: i32, %arg1: i32) -> (i32, i32) {
    %c0_i32 = arith.constant 0 : i32
    %c0_i32_0 = arith.constant 0 : i32
    return %c0_i32, %arg1 : i32, i32
  }
  func.func @transform_3(%arg0: i32, %arg1: i32) -> (i32, i32) {
    %c0_i32 = arith.constant 0 : i32
    %c0_i32_0 = arith.constant 0 : i32
    return %arg1, %c0_i32 : i32, i32
  }
  func.func @transform_4(%arg0: i32, %arg1: i32) -> (i32, i32) {
    %c0_i32 = arith.constant 0 : i32
    %c0_i32_0 = arith.constant 0 : i32
    %c0_i32_1 = arith.constant 0 : i32
    return %c0_i32, %c0_i32_0 : i32, i32
  }
  func.func @transform_5(%arg0: i32, %arg1: i32) -> (i32, i32) {
    %c0_i32 = arith.constant 0 : i32
    %c0_i32_0 = arith.constant 0 : i32
    return %arg0, %c0_i32 : i32, i32
  }
}

</mosaic_0001>

<llo_original>
// kernel: position_wise_feed_forward.1
$region0: #{position_wise_feed_forward.1}
  #allocation0 [shape = 'u32[]', space=smem, size = 0x4, offset = 0x4, fixed_abs, tag = 'smem constant byte address 0x4 - core index']
  #allocation1 [shape = 'u32[144,128]{1,0:T(1,128)}', space=vmem, size = 0x12000, scoped, tag = 'internal scratch']
  %s0 = inlined_call_operand.hbm [shape: bf16[16,128], index: 0, kind: input, shape index: {}]
  %s1 = inlined_call_operand.hbm [shape: bf16[128,128], index: 1, kind: input, shape index: {}]
  %s2 = inlined_call_operand.hbm [shape: f32[1,128], index: 2, kind: input, shape index: {}]
  %s3 = inlined_call_operand.hbm [shape: bf16[128,128], index: 3, kind: input, shape index: {}]
  %s4 = inlined_call_operand.hbm [shape: f32[1,128], index: 4, kind: input, shape index: {}]
  %s5 = inlined_call_operand.hbm [shape: f32[16,128], index: 5, kind: output, shape index: {}]
  %s6 = sld [smem:[#allocation0]]
  $region58: #{position_wise_feed_forward.1} parent=0
    _
  %s8 = ssub.s32 1, %s6
  %s9 = scalar_select 0, %s8, %s6
  $region1: #{position_wise_feed_forward.1} parent=0
    #allocation2 [shape = 'u8[4096]{0}', space=vmem, size = 0x1000, scoped, tag = 'input window, operand 0, single buffered']
    #allocation3 [shape = 's32[1]{0}', space=sflag, size = 0x4, scoped, tag = 'scoped memory for position_wise_feed_forward.1']
    #allocation4 [shape = 's32[1]{0}', space=sflag, size = 0x4, scoped, tag = 'scoped memory for position_wise_feed_forward.1']
    #allocation5 [shape = 'u8[32768]{0}', space=vmem, size = 0x8000, scoped, tag = 'input window, operand 1, single buffered']
    #allocation6 [shape = 's32[1]{0}', space=sflag, size = 0x4, scoped, tag = 'scoped memory for position_wise_feed_forward.1']
    #allocation7 [shape = 'u8[512]{0}', space=vmem, size = 0x400, scoped, tag = 'input window, operand 2, single buffered']
    #allocation8 [shape = 'u8[32768]{0}', space=vmem, size = 0x8000, scoped, tag = 'input window, operand 3, single buffered']
    #allocation9 [shape = 's32[1]{0}', space=sflag, size = 0x4, scoped, tag = 'scoped memory for position_wise_feed_forward.1']
    #allocation10 [shape = 'u8[512]{0}', space=vmem, size = 0x400, scoped, tag = 'input window, operand 4, single buffered']
    #allocation11 [shape = 'u8[8192]{0}', space=vmem, size = 0x2000, scoped, tag = 'output window, operand 0, single buffered']
    %10 = vsyncpa [#allocation3], 0
    %11 = vsyncpa [#allocation6], 0
    %12 = vsyncpa [#allocation9], 0
    %13 = vsyncpa [#allocation4], 0
    // Predicated region
    $region2: #{position_wise_feed_forward.1} parent=1 // pred_check
      _
    $region3: #{position_wise_feed_forward.1} parent=1 // pred_check_branch
      %15 = sbr.rel (0) target = $region5
    $region4: #{position_wise_feed_forward.1} parent=1 // pred_region
      %s17 = ssub.s32 128, 128
      %18 = vsyncadd [#allocation3], %s17
      %s19 = sshll.u32 [#allocation2], 4
      %s20 = int_to_ptr.vmem [resolvable:$true] %s19
      %25 = dma.hbm_to_vmem [thread:$0]  %s0, 128, %s20, [#allocation3], 64, 64, 4
    $region5: #{position_wise_feed_forward.1} parent=1 // pred_fallthru
      _
    // Predicated region
    $region6: #{position_wise_feed_forward.1} parent=1 // pred_check
      _
    $region7: #{position_wise_feed_forward.1} parent=1 // pred_check_branch
      %27 = sbr.rel (0) target = $region9
    $region8: #{position_wise_feed_forward.1} parent=1 // pred_region
      %s29 = ssub.s32 1024, 1024
      %30 = vsyncadd [#allocation6], %s29
      %s31 = sshll.u32 [#allocation5], 4
      %s32 = int_to_ptr.vmem [resolvable:$true] %s31
      %37 = dma.hbm_to_vmem [thread:$0]  %s1, 1024, %s32, [#allocation6], 64, 64, 4
    $region9: #{position_wise_feed_forward.1} parent=1 // pred_fallthru
      _
    // Predicated region
    $region10: #{position_wise_feed_forward.1} parent=1 // pred_check
      _
    $region11: #{position_wise_feed_forward.1} parent=1 // pred_check_branch
      %39 = sbr.rel (0) target = $region13
    $region12: #{position_wise_feed_forward.1} parent=1 // pred_region
      %s41 = ssub.s32 16, 16
      %42 = vsyncadd [#allocation6], %s41
      %s44 = sshll.u32 [#allocation7], 4
      %s45 = int_to_ptr.vmem [resolvable:$true] %s44
      %47 = dma.hbm_to_vmem [thread:$0]  %s2, 16, %s45, [#allocation6]
    $region13: #{position_wise_feed_forward.1} parent=1 // pred_fallthru
      _
    // Predicated region
    $region14: #{position_wise_feed_forward.1} parent=1 // pred_check
      _
    $region15: #{position_wise_feed_forward.1} parent=1 // pred_check_branch
      %49 = sbr.rel (0) target = $region17
    $region16: #{position_wise_feed_forward.1} parent=1 // pred_region
      %s51 = ssub.s32 1024, 1024
      %52 = vsyncadd [#allocation9], %s51
      %s53 = sshll.u32 [#allocation8], 4
      %s54 = int_to_ptr.vmem [resolvable:$true] %s53
      %59 = dma.hbm_to_vmem [thread:$0]  %s3, 1024, %s54, [#allocation9], 64, 64, 4
    $region17: #{position_wise_feed_forward.1} parent=1 // pred_fallthru
      _
    // Predicated region
    $region18: #{position_wise_feed_forward.1} parent=1 // pred_check
      _
    $region19: #{position_wise_feed_forward.1} parent=1 // pred_check_branch
      %61 = sbr.rel (0) target = $region21
    $region20: #{position_wise_feed_forward.1} parent=1 // pred_region
      %s63 = ssub.s32 16, 16
      %64 = vsyncadd [#allocation9], %s63
      %s66 = sshll.u32 [#allocation10], 4
      %s67 = int_to_ptr.vmem [resolvable:$true] %s66
      %69 = dma.hbm_to_vmem [thread:$0]  %s4, 16, %s67, [#allocation9]
    $region21: #{position_wise_feed_forward.1} parent=1 // pred_fallthru
      _
    // Predicated region
    $region22: #{position_wise_feed_forward.1} parent=1 // pred_check
      _
    $region23: #{position_wise_feed_forward.1} parent=1 // pred_check_branch
      %71 = sbr.rel (0) target = $region25
    $region24: #{position_wise_feed_forward.1} parent=1 // pred_region
      %72 = dma.done [#allocation3], 128
    $region25: #{position_wise_feed_forward.1} parent=1 // pred_fallthru
      _
    // Predicated region
    $region26: #{position_wise_feed_forward.1} parent=1 // pred_check
      _
    $region27: #{position_wise_feed_forward.1} parent=1 // pred_check_branch
      %74 = sbr.rel (0) target = $region29
    $region28: #{position_wise_feed_forward.1} parent=1 // pred_region
      %75 = dma.done [#allocation6], 1024
    $region29: #{position_wise_feed_forward.1} parent=1 // pred_fallthru
      _
    // Predicated region
    $region30: #{position_wise_feed_forward.1} parent=1 // pred_check
      _
    $region31: #{position_wise_feed_forward.1} parent=1 // pred_check_branch
      %77 = sbr.rel (0) target = $region33
    $region32: #{position_wise_feed_forward.1} parent=1 // pred_region
      %78 = dma.done [#allocation6], 16
    $region33: #{position_wise_feed_forward.1} parent=1 // pred_fallthru
      _
    // Predicated region
    $region34: #{position_wise_feed_forward.1} parent=1 // pred_check
      _
    $region35: #{position_wise_feed_forward.1} parent=1 // pred_check_branch
      %80 = sbr.rel (0) target = $region37
    $region36: #{position_wise_feed_forward.1} parent=1 // pred_region
      %81 = dma.done [#allocation9], 1024
    $region37: #{position_wise_feed_forward.1} parent=1 // pred_fallthru
      _
    // Predicated region
    $region38: #{position_wise_feed_forward.1} parent=1 // pred_check
      _
    $region39: #{position_wise_feed_forward.1} parent=1 // pred_check_branch
      %83 = sbr.rel (0) target = $region41
    $region40: #{position_wise_feed_forward.1} parent=1 // pred_region
      %84 = dma.done [#allocation9], 16
    $region41: #{position_wise_feed_forward.1} parent=1 // pred_fallthru
      _
    %p86 = scmp.eq.s32.totalorder 0, 0
    // Predicated region
    $region42: #{position_wise_feed_forward.1} parent=1 // pred_check
      %p87 = pneg %p86
    $region43: #{position_wise_feed_forward.1} parent=1 // pred_check_branch
      %89 = sbr.rel (%p87) target = $region45
    $region44: #{position_wise_feed_forward.1} parent=1 // pred_region
      %90 = vst [vmem:[#allocation11] sm:$0xff] 0.0
      %91 = vst [vmem:[#allocation11 + $0x8] sm:$0xff] 0.0
    $region45: #{position_wise_feed_forward.1} parent=1 // pred_fallthru
      _
    %v92 = vld [vmem:[#allocation2] sm:$0xf]
    %v93 = vld [vmem:[#allocation2 + $0x4] sm:$0xf]
    %v94 = vld [vmem:[#allocation5] sm:$0xf]
    %v95 = vld [vmem:[#allocation5 + $0x4] sm:$0xf]
    %v96 = vld [vmem:[#allocation5 + $0x8] sm:$0xf]
    %v97 = vld [vmem:[#allocation5 + $0xc] sm:$0xf]
    %v98 = vld [vmem:[#allocation5 + $0x10] sm:$0xf]
    %v99 = vld [vmem:[#allocation5 + $0x14] sm:$0xf]
    %v100 = vld [vmem:[#allocation5 + $0x18] sm:$0xf]
    %v101 = vld [vmem:[#allocation5 + $0x1c] sm:$0xf]
    %v102 = vld [vmem:[#allocation5 + $0x20] sm:$0xf]
    %v103 = vld [vmem:[#allocation5 + $0x24] sm:$0xf]
    %v104 = vld [vmem:[#allocation5 + $0x28] sm:$0xf]
    %v105 = vld [vmem:[#allocation5 + $0x2c] sm:$0xf]
    %v106 = vld [vmem:[#allocation5 + $0x30] sm:$0xf]
    %v107 = vld [vmem:[#allocation5 + $0x34] sm:$0xf]
    %v108 = vld [vmem:[#allocation5 + $0x38] sm:$0xf]
    %v109 = vld [vmem:[#allocation5 + $0x3c] sm:$0xf]
    %v110 = vld [vmem:[#allocation7] sm:$0x1]
    %v112 = vlaneseq
    %v113 = vshrl.u32 %v112, 7
    %v114 = vsub.s32 0, %v113
    %v115 = vrot.slane %v110, %v114
    %v119 = vunpack.c.l.b16 %v92
    %v120 = vunpack.c.l.b16 %v93
    %v121 = vpack.c.b16 %v120, %v119
    %v139 = vunpack.c.l.b16 %v94
    %v140 = vunpack.c.l.b16 %v95
    %v141 = vunpack.c.l.b16 %v96
    %v142 = vunpack.c.l.b16 %v97
    %v143 = vunpack.c.l.b16 %v98
    %v144 = vunpack.c.l.b16 %v99
    %v145 = vunpack.c.l.b16 %v100
    %v146 = vunpack.c.l.b16 %v101
    %v147 = vunpack.c.l.b16 %v102
    %v148 = vunpack.c.l.b16 %v103
    %v149 = vunpack.c.l.b16 %v104
    %v150 = vunpack.c.l.b16 %v105
    %v151 = vunpack.c.l.b16 %v106
    %v152 = vunpack.c.l.b16 %v107
    %v153 = vunpack.c.l.b16 %v108
    %v154 = vunpack.c.l.b16 %v109
    %v155 = vpack.c.b16 %v140, %v139
    %v156 = vpack.c.b16 %v142, %v141
    %v157 = vpack.c.b16 %v144, %v143
    %v158 = vpack.c.b16 %v146, %v145
    %v159 = vpack.c.b16 %v148, %v147
    %v160 = vpack.c.b16 %v150, %v149
    %v161 = vpack.c.b16 %v152, %v151
    %v162 = vpack.c.b16 %v154, %v153
    %171 = vmatprep.subr.bf16.mxu0 0
    %172 = vmatpush1.bf16.msra.mxu0 %v155
    %173 = vmatprep.subr.bf16.mxu0 0
    %174 = vmatpush1.bf16.msra.mxu0 %v156
    %175 = vmatprep.subr.bf16.mxu0 0
    %176 = vmatpush1.bf16.msra.mxu0 %v157
    %177 = vmatprep.subr.bf16.mxu0 0
    %178 = vmatpush1.bf16.msra.mxu0 %v158
    %179 = vmatprep.subr.bf16.mxu0 0
    %180 = vmatpush1.bf16.msra.mxu0 %v159
    %181 = vmatprep.subr.bf16.mxu0 0
    %182 = vmatpush1.bf16.msra.mxu0 %v160
    %183 = vmatprep.subr.bf16.mxu0 0
    %184 = vmatpush1.bf16.msra.mxu0 %v161
    %185 = vmatprep.subr.bf16.mxu0 0
    %186 = vmatpush1.bf16.msra.mxu0 %v162
    %187 = vmatprep.subr.bf16.mxu0 0
    %188 = vmatpush1.bf16.msra.mxu0 0
    %189 = vmatprep.subr.bf16.mxu0 0
    %190 = vmatpush1.bf16.msra.mxu0 0
    %191 = vmatprep.subr.bf16.mxu0 0
    %192 = vmatpush1.bf16.msra.mxu0 0
    %193 = vmatprep.subr.bf16.mxu0 0
    %194 = vmatpush1.bf16.msra.mxu0 0
    %195 = vmatprep.subr.bf16.mxu0 0
    %196 = vmatpush1.bf16.msra.mxu0 0
    %197 = vmatprep.subr.bf16.mxu0 0
    %198 = vmatpush1.bf16.msra.mxu0 0
    %199 = vmatprep.subr.bf16.mxu0 0
    %200 = vmatpush1.bf16.msra.mxu0 0
    %201 = vmatprep.subr.bf16.mxu0 0
    %202 = vmatpush1.bf16.msra.mxu0 0
    %203 = vmatprep.mubr.bf16.mxu0 0
    %204 = vmatmul.mubr.bf16.gmra.mrb[0].mxu0 %v121
    %v205 = vpop.f32.mrb[0].mxu0
    %v206 = vadd.f32 %v115, %v205
    %v207 = vpop.f32.mrb[0].mxu0
    %v208 = vpop.f32.mrb[0].mxu0
    %v209 = vadd.f32 %v115, %v208
    %v210 = vpop.f32.mrb[0].mxu0
    %211 = vdwg.mxu0
    %v212 = vmax.f32 %v206, 0.0
    %v213 = vmax.f32 %v209, 0.0
    %v214 = vld [vmem:[#allocation11] sm:$0xff]
    %v215 = vld [vmem:[#allocation11 + $0x8] sm:$0xff]
    %v216 = vpack.c.bf16 %v213, %v212
    %v217 = vld [vmem:[#allocation8] sm:$0xf]
    %v218 = vld [vmem:[#allocation8 + $0x4] sm:$0xf]
    %v219 = vld [vmem:[#allocation8 + $0x8] sm:$0xf]
    %v220 = vld [vmem:[#allocation8 + $0xc] sm:$0xf]
    %v221 = vld [vmem:[#allocation8 + $0x10] sm:$0xf]
    %v222 = vld [vmem:[#allocation8 + $0x14] sm:$0xf]
    %v223 = vld [vmem:[#allocation8 + $0x18] sm:$0xf]
    %v224 = vld [vmem:[#allocation8 + $0x1c] sm:$0xf]
    %v225 = vld [vmem:[#allocation8 + $0x20] sm:$0xf]
    %v226 = vld [vmem:[#allocation8 + $0x24] sm:$0xf]
    %v227 = vld [vmem:[#allocation8 + $0x28] sm:$0xf]
    %v228 = vld [vmem:[#allocation8 + $0x2c] sm:$0xf]
    %v229 = vld [vmem:[#allocation8 + $0x30] sm:$0xf]
    %v230 = vld [vmem:[#allocation8 + $0x34] sm:$0xf]
    %v231 = vld [vmem:[#allocation8 + $0x38] sm:$0xf]
    %v232 = vld [vmem:[#allocation8 + $0x3c] sm:$0xf]
    %v249 = vunpack.c.l.b16 %v217
    %v250 = vunpack.c.l.b16 %v218
    %v251 = vunpack.c.l.b16 %v219
    %v252 = vunpack.c.l.b16 %v220
    %v253 = vunpack.c.l.b16 %v221
    %v254 = vunpack.c.l.b16 %v222
    %v255 = vunpack.c.l.b16 %v223
    %v256 = vunpack.c.l.b16 %v224
    %v257 = vunpack.c.l.b16 %v225
    %v258 = vunpack.c.l.b16 %v226
    %v259 = vunpack.c.l.b16 %v227
    %v260 = vunpack.c.l.b16 %v228
    %v261 = vunpack.c.l.b16 %v229
    %v262 = vunpack.c.l.b16 %v230
    %v263 = vunpack.c.l.b16 %v231
    %v264 = vunpack.c.l.b16 %v232
    %v265 = vpack.c.b16 %v250, %v249
    %v266 = vpack.c.b16 %v252, %v251
    %v267 = vpack.c.b16 %v254, %v253
    %v268 = vpack.c.b16 %v256, %v255
    %v269 = vpack.c.b16 %v258, %v257
    %v270 = vpack.c.b16 %v260, %v259
    %v271 = vpack.c.b16 %v262, %v261
    %v272 = vpack.c.b16 %v264, %v263
    %281 = vmatprep.subr.bf16.mxu0 0
    %282 = vmatpush1.bf16.msra.mxu0 %v265
    %283 = vmatprep.subr.bf16.mxu0 0
    %284 = vmatpush1.bf16.msra.mxu0 %v266
    %285 = vmatprep.subr.bf16.mxu0 0
    %286 = vmatpush1.bf16.msra.mxu0 %v267
    %287 = vmatprep.subr.bf16.mxu0 0
    %288 = vmatpush1.bf16.msra.mxu0 %v268
    %289 = vmatprep.subr.bf16.mxu0 0
    %290 = vmatpush1.bf16.msra.mxu0 %v269
    %291 = vmatprep.subr.bf16.mxu0 0
    %292 = vmatpush1.bf16.msra.mxu0 %v270
    %293 = vmatprep.subr.bf16.mxu0 0
    %294 = vmatpush1.bf16.msra.mxu0 %v271
    %295 = vmatprep.subr.bf16.mxu0 0
    %296 = vmatpush1.bf16.msra.mxu0 %v272
    %297 = vmatprep.subr.bf16.mxu0 0
    %298 = vmatpush1.bf16.msra.mxu0 0
    %299 = vmatprep.subr.bf16.mxu0 0
    %300 = vmatpush1.bf16.msra.mxu0 0
    %301 = vmatprep.subr.bf16.mxu0 0
    %302 = vmatpush1.bf16.msra.mxu0 0
    %303 = vmatprep.subr.bf16.mxu0 0
    %304 = vmatpush1.bf16.msra.mxu0 0
    %305 = vmatprep.subr.bf16.mxu0 0
    %306 = vmatpush1.bf16.msra.mxu0 0
    %307 = vmatprep.subr.bf16.mxu0 0
    %308 = vmatpush1.bf16.msra.mxu0 0
    %309 = vmatprep.subr.bf16.mxu0 0
    %310 = vmatpush1.bf16.msra.mxu0 0
    %311 = vmatprep.subr.bf16.mxu0 0
    %312 = vmatpush1.bf16.msra.mxu0 0
    %313 = vmatprep.mubr.bf16.mxu0 0
    %314 = vmatmul.mubr.bf16.gmra.mrb[0].mxu0 %v216
    %v315 = vpop.f32.mrb[0].mxu0
    %v316 = vadd.f32 0.0, %v315
    %v317 = vpop.f32.mrb[0].mxu0
    %v318 = vpop.f32.mrb[0].mxu0
    %v319 = vadd.f32 0.0, %v318
    %v320 = vpop.f32.mrb[0].mxu0
    %321 = vdwg.mxu0
    %v322 = vadd.f32 %v214, %v316
    %v323 = vadd.f32 %v215, %v319
    %324 = vst [vmem:[#allocation11] sm:$0xff] %v322
    %325 = vst [vmem:[#allocation11 + $0x8] sm:$0xff] %v323
    // Predicated region
    $region46: #{position_wise_feed_forward.1} parent=1 // pred_check
      %p326 = pneg %p86
    $region47: #{position_wise_feed_forward.1} parent=1 // pred_check_branch
      %328 = sbr.rel (%p326) target = $region49
    $region48: #{position_wise_feed_forward.1} parent=1 // pred_region
      %v329 = vld [vmem:[#allocation11] sm:$0xff]
      %v330 = vld [vmem:[#allocation11 + $0x8] sm:$0xff]
      %v331 = vld [vmem:[#allocation10] sm:$0x1]
      %v333 = vlaneseq
      %v334 = vshrl.u32 %v333, 7
      %v335 = vsub.s32 0, %v334
      %v336 = vrot.slane %v331, %v335
      %v338 = vadd.f32 %v329, %v336
      %v339 = vadd.f32 %v330, %v336
      %340 = vst [vmem:[#allocation11] sm:$0xff] %v338
      %341 = vst [vmem:[#allocation11 + $0x8] sm:$0xff] %v339
    $region49: #{position_wise_feed_forward.1} parent=1 // pred_fallthru
      _
    // Predicated region
    $region50: #{position_wise_feed_forward.1} parent=1 // pred_check
      _
    $region51: #{position_wise_feed_forward.1} parent=1 // pred_check_branch
      %343 = sbr.rel (0) target = $region53
    $region52: #{position_wise_feed_forward.1} parent=1 // pred_region
      %s345 = ssub.s32 256, 256
      %346 = vsyncadd [#allocation4], %s345
      %s347 = sshll.u32 [#allocation11], 4
      %s348 = int_to_ptr.vmem [resolvable:$true] %s347
      %353 = dma.vmem_to_hbm [thread:$0]  %s348, 256, %s5, [#allocation4], 128, 128, 8
    $region53: #{position_wise_feed_forward.1} parent=1 // pred_fallthru
      _
    // Predicated region
    $region54: #{position_wise_feed_forward.1} parent=1 // pred_check
      _
    $region55: #{position_wise_feed_forward.1} parent=1 // pred_check_branch
      %355 = sbr.rel (0) target = $region57
    $region56: #{position_wise_feed_forward.1} parent=1 // pred_region
      %356 = dma.done [#allocation4], 256
    $region57: #{position_wise_feed_forward.1} parent=1 // pred_fallthru
      _
    %357 = vsyncpa [#allocation3], 1
    %358 = vsyncpa [#allocation6], 1
    %359 = vsyncpa [#allocation9], 1
    %360 = vsyncpa [#allocation4], 1

</llo_original>
